<compile_context>
chip_gen: v6e
topology: v6e:2x2x1
jax: 0.10.0
libtpu: 0.0.40
codegen_flags: <defaults>
</compile_context>

<pallas_src>
import functools

import jax
import jax.numpy as jnp
from jax.experimental import pallas as pl
from jax.experimental.pallas import tpu as pltpu


def _round_up(x, m):
    return ((x + m - 1) // m) * m


# ----------------------------- Pallas kernel ------------------------------ #
def _fused_conv_kernel(x_ref, w_ref, b_ref, o_ref, win_ref, *,
                       tap_offsets, c_in_p, q_blk):
    """Fused im2col + single matmul + bias for one block of images.

    x_ref:   (1, C_in_p, L_blk)   padded images, channel-major, HW flattened,
                                  concatenated along L (+ tail zeros)
    w_ref:   (C_out, T*C_in_p)    fused weight, col = (kh*KW+kw)*C_in_p + ci
    b_ref:   (C_out, 1)           bias (f32)
    o_ref:   (1, C_out, Q_blk)    lane-dense flat output (Q_blk % 128 == 0)
    win_ref: (T*C_in_p, Q_blk)    VMEM scratch: stacked im2col window
    """
    # Build the stacked window: each tap is a static lane-offset slice of the
    # flat image; each write is a full 8-sublane-aligned tile store.
    for t, d in enumerate(tap_offsets):
        win_ref[pl.ds(t * c_in_p, c_in_p), :] = x_ref[0, :, pl.ds(d, q_blk)]
    # One MXU matmul with K = T*C_in_p, f32 accumulate; bias folded in epilogue.
    acc = jnp.dot(w_ref[...], win_ref[...], preferred_element_type=jnp.float32)
    o_ref[0] = (acc + b_ref[...]).astype(o_ref.dtype)


# ------------------------------- wrapper ----------------------------------- #
def _same_dim_conv2d(x_nchw, weight, bias, kernel_size, stride, pad_h, pad_w,
                     compute_dtype=None, num_blocks=2, lane_align=128):
    n, c_in, h, w = x_nchw.shape
    c_out = weight.shape[0]
    k, s = kernel_size, stride

    hp = h + pad_h[0] + pad_h[1]
    wp = w + pad_w[0] + pad_w[1]
    h_out = (hp - k) // s + 1
    w_out = (wp - k) // s + 1

    # Flat-HW formulation: y[co, q] = b + sum_{t,ci} W[co, t, ci] * x_flat[ci, q + d_t]
    # with d_t = kh*Wp + kw; valid outputs sit at q = (oh*s)*Wp + ow*s.
    r_rows = (h_out - 1) * s + 1
    q_len = r_rows * wp                       # valid flat range per image
    d_max = (k - 1) * wp + (k - 1)

    c_in_p = _round_up(c_in, 8)               # sublane-aligned rows per tap
    k_tot = k * k * c_in_p                    # fused contraction depth

    g = max(1, min(num_blocks, n))            # grid steps (>=2 feeds both v7x TCs)
    ipb = -(-n // g)                          # images per block
    n_pad = g * ipb - n

    l_img = max(hp * wp, q_len + d_max)       # per-image slab (no cross-image bleed)
    q_blk = _round_up((ipb - 1) * l_img + q_len, lane_align)       # lane-dense Q
    l_blk = _round_up(max(ipb * l_img, q_blk + d_max), lane_align)  # in-bounds reads

    # ---- host-side layout (cheap at these sizes; see TODO at top) ----------
    x = jnp.pad(x_nchw, ((0, 0), (0, 0), pad_h, pad_w))   # ConstantPad2d / conv pad
    x_flat = x.reshape(n, c_in, hp * wp)                  # row-major HW -> free reshape
    x_flat = jnp.pad(x_flat,
                     ((0, n_pad), (0, c_in_p - c_in), (0, l_img - hp * wp)))
    # Group images into blocks, concatenated along the flat axis.
    x_blk = (x_flat.reshape(g, ipb, c_in_p, l_img)
                   .transpose(0, 2, 1, 3)
                   .reshape(g, c_in_p, ipb * l_img))
    x_blk = jnp.pad(x_blk, ((0, 0), (0, 0), (0, l_blk - ipb * l_img)))

    # (C_out, C_in, KH, KW) -> (C_out, T*C_in_p), col = (kh*KW + kw)*C_in_p + ci.
    w2 = jnp.transpose(weight, (0, 2, 3, 1))               # (C_out, KH, KW, C_in)
    w2 = jnp.pad(w2, ((0, 0), (0, 0), (0, 0), (0, c_in_p - c_in)))
    w2 = w2.reshape(c_out, k_tot)
    b_col = bias.reshape(c_out, 1).astype(jnp.float32)

    if compute_dtype is not None:   # e.g. jnp.bfloat16 on v6e/v7x (f32 accumulate kept)
        x_blk = x_blk.astype(compute_dtype)
        w2 = w2.astype(compute_dtype)
    win_dtype = x_blk.dtype

    tap_offsets = tuple(kh * wp + kw for kh in range(k) for kw in range(k))

    out_dtype = x_nchw.dtype
    flops = 2 * g * c_out * k_tot * q_blk
    bytes_accessed = (x_blk.size * x_blk.dtype.itemsize
                      + w2.size * w2.dtype.itemsize
                      + b_col.size * b_col.dtype.itemsize
                      + g * c_out * q_blk * jnp.dtype(out_dtype).itemsize)

    y = pl.pallas_call(
        functools.partial(_fused_conv_kernel, tap_offsets=tap_offsets,
                          c_in_p=c_in_p, q_blk=q_blk),
        out_shape=jax.ShapeDtypeStruct((g, c_out, q_blk), out_dtype),
        grid_spec=pltpu.PrefetchScalarGridSpec(
            num_scalar_prefetch=0,
            grid=(g,),
            in_specs=[
                pl.BlockSpec((1, c_in_p, l_blk), lambda i: (i, 0, 0)),
                pl.BlockSpec((c_out, k_tot), lambda i: (0, 0)),
                pl.BlockSpec((c_out, 1), lambda i: (0, 0)),
            ],
            out_specs=pl.BlockSpec((1, c_out, q_blk), lambda i: (i, 0, 0)),
            scratch_shapes=[pltpu.VMEM((k_tot, q_blk), win_dtype)],
        ),
        compiler_params=pltpu.CompilerParams(
            dimension_semantics=("parallel",)),
        cost_estimate=pl.CostEstimate(flops=flops, transcendentals=0,
                                      bytes_accessed=bytes_accessed),
    )(x_blk, w2, b_col)

    # (G, C_out, Q_blk) -> per-image flat (N, C_out, q_len) -> NCHW.
    imgs = [y[:, :, j * l_img: j * l_img + q_len] for j in range(ipb)]
    y = jnp.stack(imgs, axis=1).reshape(g * ipb, c_out, q_len)[:n]
    y = y.reshape(n, c_out, r_rows, wp)
    # Valid outputs live at flat row oh*s, col ow*s; remaining columns are the
    # padded-right garbage and are dropped here.
    return y[:, :, ::s, ::s][:, :, :h_out, :w_out]


# ----------------------------- Module wrapper ------------------------------ #
def get_pad(kernel_size, stride):
    """Mirror of SameDimConv2d.get_pad: int for symmetric, tuple for asymmetric."""
    if (kernel_size - stride) % 2 == 0:
        return (kernel_size - stride) // 2
    left = (kernel_size - stride) // 2
    return (left, left + 1)


class SameDimConv2dPallas:
    def __init__(self, c_in, c_out, kernel_size, stride, key, compute_dtype=None):
        self.c_in = c_in
        self.c_out = c_out
        self.k = kernel_size
        self.stride = stride
        self.compute_dtype = compute_dtype

        pad = get_pad(kernel_size, stride)
        if isinstance(pad, tuple):
            # ConstantPad2d(padding=(l, r) * 2) -> (W_left, W_right, H_top, H_bottom)
            self.pad_h = (pad[0], pad[1])
            self.pad_w = (pad[0], pad[1])
        else:
            self.pad_h = (pad, pad)
            self.pad_w = (pad, pad)

        kw_key, kb_key = jax.random.split(key)
        # Deterministic synthetic init (PyTorch layout: (C_out, C_in, KH, KW)).
        fan_in = c_in * kernel_size * kernel_size
        bound = 1.0 / (fan_in ** 0.5)
        self.weight = jax.random.uniform(
            kw_key, (c_out, c_in, kernel_size, kernel_size),
            minval=-bound, maxval=bound, dtype=jnp.float32)
        self.bias = jax.random.uniform(
            kb_key, (c_out,), minval=-bound, maxval=bound, dtype=jnp.float32)

    def __call__(self, x_nchw):
        return _same_dim_conv2d(x_nchw, self.weight, self.bias, self.k,
                                self.stride, self.pad_h, self.pad_w,
                                self.compute_dtype)


# --------------------------------- main ------------------------------------ #
if __name__ == "__main__":
    key = jax.random.PRNGKey(0)
    k_x, k_p = jax.random.split(key)

    # Small shapes consistent with the module: batch=2, c_in=4, H=W=16.
    N, C_IN, H, W = 2, 4, 16, 16
    C_OUT, KSIZE, STRIDE = 8, 3, 1

    x = jax.random.normal(k_x, (N, C_IN, H, W), dtype=jnp.float32)

    # Default f32 compute so the 1e-4 check vs the f32 XLA reference holds.
    # (Pass compute_dtype=jnp.bfloat16 on v6e/v7x at realistic sizes.)
    module = SameDimConv2dPallas(C_IN, C_OUT, KSIZE, STRIDE, k_p)
    out = module(x)
    out = jax.block_until_ready(out)

    # Sanity check against XLA's conv (same padding / weight conventions).
    pad_spatial = (module.pad_h, module.pad_w)
    ref = jax.lax.conv_general_dilated(
        x, module.weight,
        window_strides=(STRIDE, STRIDE),
        padding=pad_spatial,
        dimension_numbers=("NCHW", "OIHW", "NCHW"),
    ) + module.bias.reshape(1, C_OUT, 1, 1)

    assert out.shape == (N, C_OUT, H, W), out.shape
    assert jnp.allclose(out, ref, atol=1e-4, rtol=1e-4), "mismatch vs reference conv"

    print("KERNEL_OK")
</pallas_src>

<mosaic_0001>
module attributes {stable_mosaic.version = 11 : i64} {
  func.func @_fused_conv_kernel(%arg0: i32, %arg1: memref<1x8x512xf32, #tpu.memory_space<vmem>>, %arg2: memref<8x72xf32, #tpu.memory_space<vmem>>, %arg3: memref<8x1xf32, #tpu.memory_space<vmem>>, %arg4: memref<1x8x384xf32, #tpu.memory_space<vmem>>, %arg5: memref<72x384xf32, #tpu.memory_space<vmem>>) attributes {dimension_semantics = [#tpu.dimension_semantics<parallel>], iteration_bounds = array<i64: 2>, scalar_prefetch = 0 : i64, scratch_operands = 1 : i64, tpu.core_type = #tpu.core_type<tc>, window_params = [{transform_indices = @transform_0, window_bounds = array<i64: 1, 8, 512>}, {pipeline_mode = #tpu.pipeline_mode<synchronous>, transform_indices = @transform_1, window_bounds = array<i64: 8, 72>}, {pipeline_mode = #tpu.pipeline_mode<synchronous>, transform_indices = @transform_2, window_bounds = array<i64: 8, 1>}, {transform_indices = @transform_3, window_bounds = array<i64: 1, 8, 384>}]} {
    %c0 = arith.constant 0 : index
    %c0_0 = arith.constant 0 : index
    %c0_1 = arith.constant 0 : index
    %0 = vector.load %arg1[%c0, %c0_0, %c0_1] : memref<1x8x512xf32, #tpu.memory_space<vmem>>, vector<1x8x384xf32>
    %1 = vector.shape_cast %0 : vector<1x8x384xf32> to vector<8x384xf32>
    %c0_2 = arith.constant 0 : index
    %c0_3 = arith.constant 0 : index
    %2 = vector.load %arg5[%c0_2, %c0_3] : memref<72x384xf32, #tpu.memory_space<vmem>>, vector<8x384xf32>
    tpu.vector_store %arg5[%c0_2, %c0_3], %1 {strides = array<i32>} : memref<72x384xf32, #tpu.memory_space<vmem>>, vector<8x384xf32>,
    %c0_4 = arith.constant 0 : index
    %c0_5 = arith.constant 0 : index
    %c1 = arith.constant 1 : index
    %3 = vector.load %arg1[%c0_4, %c0_5, %c1] : memref<1x8x512xf32, #tpu.memory_space<vmem>>, vector<1x8x384xf32>
    %4 = vector.shape_cast %3 : vector<1x8x384xf32> to vector<8x384xf32>
    %c8 = arith.constant 8 : index
    %c0_6 = arith.constant 0 : index
    %5 = vector.load %arg5[%c8, %c0_6] : memref<72x384xf32, #tpu.memory_space<vmem>>, vector<8x384xf32>
    tpu.vector_store %arg5[%c8, %c0_6], %4 {strides = array<i32>} : memref<72x384xf32, #tpu.memory_space<vmem>>, vector<8x384xf32>,
    %c0_7 = arith.constant 0 : index
    %c0_8 = arith.constant 0 : index
    %c2 = arith.constant 2 : index
    %6 = vector.load %arg1[%c0_7, %c0_8, %c2] : memref<1x8x512xf32, #tpu.memory_space<vmem>>, vector<1x8x384xf32>
    %7 = vector.shape_cast %6 : vector<1x8x384xf32> to vector<8x384xf32>
    %c16 = arith.constant 16 : index
    %c0_9 = arith.constant 0 : index
    %8 = vector.load %arg5[%c16, %c0_9] : memref<72x384xf32, #tpu.memory_space<vmem>>, vector<8x384xf32>
    tpu.vector_store %arg5[%c16, %c0_9], %7 {strides = array<i32>} : memref<72x384xf32, #tpu.memory_space<vmem>>, vector<8x384xf32>,
    %c0_10 = arith.constant 0 : index
    %c0_11 = arith.constant 0 : index
    %c18 = arith.constant 18 : index
    %9 = vector.load %arg1[%c0_10, %c0_11, %c18] : memref<1x8x512xf32, #tpu.memory_space<vmem>>, vector<1x8x384xf32>
    %10 = vector.shape_cast %9 : vector<1x8x384xf32> to vector<8x384xf32>
    %c24 = arith.constant 24 : index
    %c0_12 = arith.constant 0 : index
    %11 = vector.load %arg5[%c24, %c0_12] : memref<72x384xf32, #tpu.memory_space<vmem>>, vector<8x384xf32>
    tpu.vector_store %arg5[%c24, %c0_12], %10 {strides = array<i32>} : memref<72x384xf32, #tpu.memory_space<vmem>>, vector<8x384xf32>,
    %c0_13 = arith.constant 0 : index
    %c0_14 = arith.constant 0 : index
    %c19 = arith.constant 19 : index
    %12 = vector.load %arg1[%c0_13, %c0_14, %c19] : memref<1x8x512xf32, #tpu.memory_space<vmem>>, vector<1x8x384xf32>
    %13 = vector.shape_cast %12 : vector<1x8x384xf32> to vector<8x384xf32>
    %c32 = arith.constant 32 : index
    %c0_15 = arith.constant 0 : index
    %14 = vector.load %arg5[%c32, %c0_15] : memref<72x384xf32, #tpu.memory_space<vmem>>, vector<8x384xf32>
    tpu.vector_store %arg5[%c32, %c0_15], %13 {strides = array<i32>} : memref<72x384xf32, #tpu.memory_space<vmem>>, vector<8x384xf32>,
    %c0_16 = arith.constant 0 : index
    %c0_17 = arith.constant 0 : index
    %c20 = arith.constant 20 : index
    %15 = vector.load %arg1[%c0_16, %c0_17, %c20] : memref<1x8x512xf32, #tpu.memory_space<vmem>>, vector<1x8x384xf32>
    %16 = vector.shape_cast %15 : vector<1x8x384xf32> to vector<8x384xf32>
    %c40 = arith.constant 40 : index
    %c0_18 = arith.constant 0 : index
    %17 = vector.load %arg5[%c40, %c0_18] : memref<72x384xf32, #tpu.memory_space<vmem>>, vector<8x384xf32>
    tpu.vector_store %arg5[%c40, %c0_18], %16 {strides = array<i32>} : memref<72x384xf32, #tpu.memory_space<vmem>>, vector<8x384xf32>,
    %c0_19 = arith.constant 0 : index
    %c0_20 = arith.constant 0 : index
    %c36 = arith.constant 36 : index
    %18 = vector.load %arg1[%c0_19, %c0_20, %c36] : memref<1x8x512xf32, #tpu.memory_space<vmem>>, vector<1x8x384xf32>
    %19 = vector.shape_cast %18 : vector<1x8x384xf32> to vector<8x384xf32>
    %c48 = arith.constant 48 : index
    %c0_21 = arith.constant 0 : index
    %20 = vector.load %arg5[%c48, %c0_21] : memref<72x384xf32, #tpu.memory_space<vmem>>, vector<8x384xf32>
    tpu.vector_store %arg5[%c48, %c0_21], %19 {strides = array<i32>} : memref<72x384xf32, #tpu.memory_space<vmem>>, vector<8x384xf32>,
    %c0_22 = arith.constant 0 : index
    %c0_23 = arith.constant 0 : index
    %c37 = arith.constant 37 : index
    %21 = vector.load %arg1[%c0_22, %c0_23, %c37] : memref<1x8x512xf32, #tpu.memory_space<vmem>>, vector<1x8x384xf32>
    %22 = vector.shape_cast %21 : vector<1x8x384xf32> to vector<8x384xf32>
    %c56 = arith.constant 56 : index
    %c0_24 = arith.constant 0 : index
    %23 = vector.load %arg5[%c56, %c0_24] : memref<72x384xf32, #tpu.memory_space<vmem>>, vector<8x384xf32>
    tpu.vector_store %arg5[%c56, %c0_24], %22 {strides = array<i32>} : memref<72x384xf32, #tpu.memory_space<vmem>>, vector<8x384xf32>,
    %c0_25 = arith.constant 0 : index
    %c0_26 = arith.constant 0 : index
    %c38 = arith.constant 38 : index
    %24 = vector.load %arg1[%c0_25, %c0_26, %c38] : memref<1x8x512xf32, #tpu.memory_space<vmem>>, vector<1x8x384xf32>
    %25 = vector.shape_cast %24 : vector<1x8x384xf32> to vector<8x384xf32>
    %c64 = arith.constant 64 : index
    %c0_27 = arith.constant 0 : index
    %26 = vector.load %arg5[%c64, %c0_27] : memref<72x384xf32, #tpu.memory_space<vmem>>, vector<8x384xf32>
    tpu.vector_store %arg5[%c64, %c0_27], %25 {strides = array<i32>} : memref<72x384xf32, #tpu.memory_space<vmem>>, vector<8x384xf32>,
    %c0_28 = arith.constant 0 : index
    %c0_29 = arith.constant 0 : index
    %27 = vector.load %arg2[%c0_28, %c0_29] : memref<8x72xf32, #tpu.memory_space<vmem>>, vector<8x72xf32>
    %c0_30 = arith.constant 0 : index
    %c0_31 = arith.constant 0 : index
    %28 = vector.load %arg5[%c0_30, %c0_31] : memref<72x384xf32, #tpu.memory_space<vmem>>, vector<72x384xf32>
    %cst = arith.constant dense<0.000000e+00> : vector<8x384xf32>
    %29 = tpu.matmul %27, %28, %cst {dimension_numbers = #tpu.dot_dimension_numbers<[1], [0], [0], [1], [0, 0, 1, 1], [], []>} : vector<8x72xf32>, vector<72x384xf32>, vector<8x384xf32> -> vector<8x384xf32>
    %c0_32 = arith.constant 0 : index
    %c0_33 = arith.constant 0 : index
    %30 = vector.load %arg3[%c0_32, %c0_33] : memref<8x1xf32, #tpu.memory_space<vmem>>, vector<8x1xf32>
    %31 = vector.broadcast %30 : vector<8x1xf32> to vector<8x384xf32>
    %32 = arith.addf %29, %31 : vector<8x384xf32>
    %c0_34 = arith.constant 0 : index
    %c0_35 = arith.constant 0 : index
    %c0_36 = arith.constant 0 : index
    %33 = vector.load %arg4[%c0_34, %c0_35, %c0_36] : memref<1x8x384xf32, #tpu.memory_space<vmem>>, vector<1x8x384xf32>
    %34 = vector.shape_cast %33 : vector<1x8x384xf32> to vector<8x384xf32>
    %35 = vector.shape_cast %32 : vector<8x384xf32> to vector<1x8x384xf32>
    tpu.vector_store %arg4[%c0_34, %c0_35, %c0_36], %35 {strides = array<i32>} : memref<1x8x384xf32, #tpu.memory_space<vmem>>, vector<1x8x384xf32>,
    return
  }
  func.func @transform_0(%arg0: i32) -> (i32, i32, i32) {
    %c0_i32 = arith.constant 0 : i32
    %c0_i32_0 = arith.constant 0 : i32
    %c0_i32_1 = arith.constant 0 : i32
    return %arg0, %c0_i32, %c0_i32_0 : i32, i32, i32
  }
  func.func @transform_1(%arg0: i32) -> (i32, i32) {
    %c0_i32 = arith.constant 0 : i32
    %c0_i32_0 = arith.constant 0 : i32
    %c0_i32_1 = arith.constant 0 : i32
    return %c0_i32, %c0_i32_0 : i32, i32
  }
  func.func @transform_2(%arg0: i32) -> (i32, i32) {
    %c0_i32 = arith.constant 0 : i32
    %c0_i32_0 = arith.constant 0 : i32
    %c0_i32_1 = arith.constant 0 : i32
    return %c0_i32, %c0_i32_0 : i32, i32
  }
  func.func @transform_3(%arg0: i32) -> (i32, i32, i32) {
    %c0_i32 = arith.constant 0 : i32
    %c0_i32_0 = arith.constant 0 : i32
    %c0_i32_1 = arith.constant 0 : i32
    return %arg0, %c0_i32, %c0_i32_0 : i32, i32, i32
  }
}

</mosaic_0001>

<llo_original>
// kernel: tpu_custom_call.1
$region0: #{tpu_custom_call.1}
  #allocation0 [shape = 'u32[]', space=smem, size = 0x4, offset = 0x4, fixed_abs, tag = 'smem constant byte address 0x4 - core index']
  #allocation1 [shape = 'u32[144,128]{1,0:T(1,128)}', space=vmem, size = 0x12000, scoped, tag = 'internal scratch']
  #allocation2 [shape = 'f32[72,384]{1,0:T(8,128)}', space=vmem, size = 0x1b000, scoped, tag = 'scratch operand']
  %s0 = inlined_call_operand.hbm [shape: f32[2,8,512], index: 0, kind: input, shape index: {}]
  %s1 = inlined_call_operand.vmem [shape: f32[8,72], index: 1, kind: input, shape index: {}]
  %s2 = inlined_call_operand.vmem [shape: f32[8,1], index: 2, kind: input, shape index: {}]
  %s3 = inlined_call_operand.hbm [shape: f32[2,8,384], index: 3, kind: output, shape index: {}]
  %s4 = sld [smem:[#allocation0]]
  $region49: #{tpu_custom_call.1} parent=0
    _
  %s6 = ssub.s32 1, %s4
  %s7 = scalar_select 0, %s6, %s4
  $region1: #{tpu_custom_call.1} parent=0
    #allocation3 [shape = 'u8[32768]{0}', space=vmem, size = 0x8000, scoped, tag = 'input window, operand 0']
    #allocation4 [shape = 's32[2]{0}', space=sflag, size = 0x8, scoped, tag = 'scoped memory for tpu_custom_call.1']
    #allocation5 [shape = 's32[2]{0}', space=sflag, size = 0x8, scoped, tag = 'scoped memory for tpu_custom_call.1']
    #allocation6 [shape = 'u8[24576]{0}', space=vmem, size = 0x6000, scoped, tag = 'output window, operand 0']
    %8 = vsyncpa [#allocation4], 0
    %s9 = scalar_lea.sflag [#allocation4], 1
    %10 = vsyncpa %s9, 0
    %11 = vsyncpa [#allocation5], 0
    %s12 = scalar_lea.sflag [#allocation5], 1
    %13 = vsyncpa %s12, 0
    loop: start=0, step=1, limit=4
    $region2: #{tpu_custom_call.1} parent=1 // loop_pre_header
      _
    $region3: #{tpu_custom_call.1} parent=1 // loop_header
      %s15 = sphi 0, %s19
      %p16 = scmp.ge.s32.totalorder %s15, 4
      %s25 = sphi 0, %s27
      %s28 = sphi 0, %s25
      %s29 = sphi 0, %s28
      %s45 = sphi 0, %s29
      %s49 = sphi 0, %s49
      %s51 = sphi 0, %s49
      %s52 = sphi 0, %s51
      %s66 = sphi 0, %s52
      %s70 = sphi 0, %s70
      %s72 = sphi 0, %s70
      %s73 = sphi 0, %s72
      %s87 = sphi 0, %s73
      %s93 = sphi 0, %s95
      %s96 = sphi 0, %s93
      %s97 = sphi 0, %s96
      %s113 = sphi 0, %s97
    $region4: #{tpu_custom_call.1} parent=1 // loop_header_branch
      %18 = sbr.rel (%p16) target = $region8
    $region5: #{tpu_custom_call.1} parent=1 // loop_body
      %s20 = ssub.s32 %s15, 1
      %s21 = ssub.s32 %s15, 2
      %s22 = sadd.s32 %s15, 1
      %s23 = ssub.s32 %s15, %s22
      %p24 = scmp.eq.s32.totalorder %s23, 0
      %s26 = sadd.s32 %s25, 1
      %s27 = scalar_select %p24, %s25, %s26
      %p30 = pneg %p24
      %p31 = scmp.eq.s32.totalorder %s15, 1
      %p32 = por %p30, %p31
      %p33 = scmp.ne.s32.totalorder %s25, %s28
      %p34 = scmp.eq.s32.totalorder %s15, 0
      %p35 = por %p33, %p34
      %p36 = scmp.ne.s32.totalorder %s25, %s28
      %p37 = scmp.eq.s32.totalorder %s20, 1
      %p38 = por %p36, %p37
      %p39 = scmp.ne.s32.totalorder %s28, %s29
      %p40 = scmp.eq.s32.totalorder %s20, 0
      %p41 = por %p39, %p40
      %p42 = scmp.ne.s32.totalorder %s28, %s29
      %p43 = scmp.eq.s32.totalorder %s21, 1
      %p44 = por %p42, %p43
      %p46 = scmp.ne.s32.totalorder %s29, %s45
      %p47 = scmp.eq.s32.totalorder %s21, 0
      %p48 = por %p46, %p47
      %s50 = sadd.s32 %s49, 1
      %p53 = scmp.eq.s32.totalorder %s15, 1
      %p54 = scmp.ne.s32.totalorder %s49, %s51
      %p55 = scmp.eq.s32.totalorder %s15, 0
      %p56 = por %p54, %p55
      %p57 = scmp.ne.s32.totalorder %s49, %s51
      %p58 = scmp.eq.s32.totalorder %s20, 1
      %p59 = por %p57, %p58
      %p60 = scmp.ne.s32.totalorder %s51, %s52
      %p61 = scmp.eq.s32.totalorder %s20, 0
      %p62 = por %p60, %p61
      %p63 = scmp.ne.s32.totalorder %s51, %s52
      %p64 = scmp.eq.s32.totalorder %s21, 1
      %p65 = por %p63, %p64
      %p67 = scmp.ne.s32.totalorder %s52, %s66
      %p68 = scmp.eq.s32.totalorder %s21, 0
      %p69 = por %p67, %p68
      %s71 = sadd.s32 %s70, 1
      %p74 = scmp.eq.s32.totalorder %s15, 1
      %p75 = scmp.ne.s32.totalorder %s70, %s72
      %p76 = scmp.eq.s32.totalorder %s15, 0
      %p77 = por %p75, %p76
      %p78 = scmp.ne.s32.totalorder %s70, %s72
      %p79 = scmp.eq.s32.totalorder %s20, 1
      %p80 = por %p78, %p79
      %p81 = scmp.ne.s32.totalorder %s72, %s73
      %p82 = scmp.eq.s32.totalorder %s20, 0
      %p83 = por %p81, %p82
      %p84 = scmp.ne.s32.totalorder %s72, %s73
      %p85 = scmp.eq.s32.totalorder %s21, 1
      %p86 = por %p84, %p85
      %p88 = scmp.ne.s32.totalorder %s73, %s87
      %p89 = scmp.eq.s32.totalorder %s21, 0
      %p90 = por %p88, %p89
      %s91 = ssub.s32 %s15, %s22
      %p92 = scmp.eq.s32.totalorder %s91, 0
      %s94 = sadd.s32 %s93, 1
      %s95 = scalar_select %p92, %s93, %s94
      %p98 = pneg %p92
      %p99 = scmp.eq.s32.totalorder %s15, 1
      %p100 = por %p98, %p99
      %p101 = scmp.ne.s32.totalorder %s93, %s96
      %p102 = scmp.eq.s32.totalorder %s15, 0
      %p103 = por %p101, %p102
      %p104 = scmp.ne.s32.totalorder %s93, %s96
      %p105 = scmp.eq.s32.totalorder %s20, 1
      %p106 = por %p104, %p105
      %p107 = scmp.ne.s32.totalorder %s96, %s97
      %p108 = scmp.eq.s32.totalorder %s20, 0
      %p109 = por %p107, %p108
      %p110 = scmp.ne.s32.totalorder %s96, %s97
      %p111 = scmp.eq.s32.totalorder %s21, 1
      %p112 = por %p110, %p111
      %p114 = scmp.ne.s32.totalorder %s97, %s113
      %p115 = scmp.eq.s32.totalorder %s21, 0
      %p116 = por %p114, %p115
      %p117 = scmp.le.s32.totalorder 1, %s15
      %p118 = scmp.lt.s32.totalorder %s15, 3
      %p119 = pnand %p117, %p118
      %p120 = pneg %p119
      // Predicated region
      $region9: #{tpu_custom_call.1} parent=5 // pred_check
        _
      $region10: #{tpu_custom_call.1} parent=5 // pred_check_branch
        %122 = sbr.rel (%p119) target = $region12
      $region11: #{tpu_custom_call.1} parent=5 // pred_region
        %s123 = ssub.s32 %s15, 1
        // Predicated region
        $region13: #{tpu_custom_call.1} parent=11 // pred_check
          %p124 = pneg %p62
        $region14: #{tpu_custom_call.1} parent=11 // pred_check_branch
          %126 = sbr.rel (%p124) target = $region16
        $region15: #{tpu_custom_call.1} parent=11 // pred_region
          _
        $region16: #{tpu_custom_call.1} parent=11 // pred_fallthru
          _
        // Predicated region
        $region17: #{tpu_custom_call.1} parent=11 // pred_check
          %p127 = pneg %p83
        $region18: #{tpu_custom_call.1} parent=11 // pred_check_branch
          %129 = sbr.rel (%p127) target = $region20
        $region19: #{tpu_custom_call.1} parent=11 // pred_region
          _
        $region20: #{tpu_custom_call.1} parent=11 // pred_fallthru
          _
      $region12: #{tpu_custom_call.1} parent=5 // pred_fallthru
        _
      %p130 = scmp.lt.s32.totalorder %s15, 2
      // Predicated region
      $region21: #{tpu_custom_call.1} parent=5 // pred_check
        %p131 = pneg %p130
      $region22: #{tpu_custom_call.1} parent=5 // pred_check_branch
        %133 = sbr.rel (%p131) target = $region24
      $region23: #{tpu_custom_call.1} parent=5 // pred_region
        // Predicated region
        $region25: #{tpu_custom_call.1} parent=23 // pred_check
          %p134 = pneg %p35
        $region26: #{tpu_custom_call.1} parent=23 // pred_check_branch
          %136 = sbr.rel (%p134) target = $region28
        $region27: #{tpu_custom_call.1} parent=23 // pred_region
          %s137 = sand.u32 %s25, 1
          %s138 = scalar_lea.sflag [#allocation4], %s137
          %s139 = sand.u32 %s25, 1
          %s140 = smul.addr %s139, 32
          %s141 = scalar_lea.vmem [#allocation3], %s140
          %s143 = ssub.s32 512, 512
          %144 = vsyncadd %s138, %s143
          %s145 = smul.addr %s15, 4
          %s146 = smul.addr %s145, 128
          %s147 = scalar_lea.hbm %s0, %s146
          %s149 = sshll.u32 %s141, 4
          %s150 = int_to_ptr.vmem [resolvable:$true] %s149
          %152 = dma.hbm_to_vmem [thread:$0]  %s147, 512, %s150, %s138
        $region28: #{tpu_custom_call.1} parent=23 // pred_fallthru
          _
      $region24: #{tpu_custom_call.1} parent=5 // pred_fallthru
        _
      %p153 = scmp.le.s32.totalorder 1, %s15
      %p154 = scmp.lt.s32.totalorder %s15, 3
      %p155 = pnand %p153, %p154
      %p156 = pneg %p155
      // Predicated region
      $region29: #{tpu_custom_call.1} parent=5 // pred_check
        _
      $region30: #{tpu_custom_call.1} parent=5 // pred_check_branch
        %158 = sbr.rel (%p155) target = $region32
      $region31: #{tpu_custom_call.1} parent=5 // pred_region
        %s159 = ssub.s32 %s15, 1
        %s160 = sand.u32 %s28, 1
        %s161 = scalar_lea.sflag [#allocation4], %s160
        %s162 = sand.u32 %s28, 1
        %s163 = smul.addr %s162, 32
        %s164 = scalar_lea.vmem [#allocation3], %s163
        // Predicated region
        $region33: #{tpu_custom_call.1} parent=31 // pred_check
          %p165 = pneg %p41
        $region34: #{tpu_custom_call.1} parent=31 // pred_check_branch
          %167 = sbr.rel (%p165) target = $region36
        $region35: #{tpu_custom_call.1} parent=31 // pred_region
          %168 = dma.done %s161, 512
        $region36: #{tpu_custom_call.1} parent=31 // pred_fallthru
          _
        %s169 = sand.u32 %s28, 1
        %s170 = scalar_lea.sflag [#allocation4], %s169
        %s171 = sand.u32 %s28, 1
        %s172 = smul.addr %s171, 32
        %s173 = scalar_lea.vmem [#allocation3], %s172
        %p174 = pneg %p41
        %p175 = pneg %p38
        %p176 = pneg %p62
        %p177 = pneg %p59
        %p178 = pneg %p83
        %p179 = pneg %p80
        %p180 = pneg %p109
        %p181 = pneg %p106
        %s182 = sand.u32 %s96, 1
        %s183 = scalar_lea.sflag [#allocation5], %s182
        %s184 = sand.u32 %s96, 1
        %s185 = smul.addr %s184, 24
        %s186 = scalar_lea.vmem [#allocation6], %s185
        %v187 = vld [vmem:[%s164] sm:$0xff]
        %v188 = vld [vmem:[%s164 + $0x8] sm:$0xff]
        %v189 = vld [vmem:[%s164 + $0x10] sm:$0xff]
        %190 = vst [vmem:[#allocation2] sm:$0xff] %v187
        %191 = vst [vmem:[#allocation2 + $0x8] sm:$0xff] %v188
        %192 = vst [vmem:[#allocation2 + $0x10] sm:$0xff] %v189
        %v193 = vld [vmem:[%s164] sm:$0xff]
        %v194 = vld [vmem:[%s164 + $0x8] sm:$0xff]
        %v195 = vld [vmem:[%s164 + $0x10] sm:$0xff]
        %v196 = vld [vmem:[%s164 + $0x18] sm:$0xff]
        %201 = vrot.lane.b32.xlu0 %v193, 127
        %v202 = vpop.permute.xlu0 %201
        %203 = vrot.lane.b32.xlu0 %v194, 127
        %v204 = vpop.permute.xlu0 %203
        %205 = vrot.lane.b32.xlu0 %v195, 127
        %v206 = vpop.permute.xlu0 %205
        %207 = vrot.lane.b32.xlu0 %v196, 127
        %v208 = vpop.permute.xlu0 %207
        %vm209 = vcmask 1039360
        %v210 = vsel %vm209, %v202, %v204
        %v211 = vsel %vm209, %v204, %v206
        %v212 = vsel %vm209, %v206, %v208
        %216 = vst [vmem:[#allocation2 + $0x18] sm:$0xff] %v210
        %217 = vst [vmem:[#allocation2 + $0x20] sm:$0xff] %v211
        %218 = vst [vmem:[#allocation2 + $0x28] sm:$0xff] %v212
        %v219 = vld [vmem:[%s164] sm:$0xff]
        %v220 = vld [vmem:[%s164 + $0x8] sm:$0xff]
        %v221 = vld [vmem:[%s164 + $0x10] sm:$0xff]
        %v222 = vld [vmem:[%s164 + $0x18] sm:$0xff]
        %227 = vrot.lane.b32.xlu0 %v219, 126
        %v228 = vpop.permute.xlu0 %227
        %229 = vrot.lane.b32.xlu0 %v220, 126
        %v230 = vpop.permute.xlu0 %229
        %231 = vrot.lane.b32.xlu0 %v221, 126
        %v232 = vpop.permute.xlu0 %231
        %233 = vrot.lane.b32.xlu0 %v222, 126
        %v234 = vpop.permute.xlu0 %233
        %vm235 = vcmask 1031168
        %v236 = vsel %vm235, %v228, %v230
        %v237 = vsel %vm235, %v230, %v232
        %v238 = vsel %vm235, %v232, %v234
        %242 = vst [vmem:[#allocation2 + $0x30] sm:$0xff] %v236
        %243 = vst [vmem:[#allocation2 + $0x38] sm:$0xff] %v237
        %244 = vst [vmem:[#allocation2 + $0x40] sm:$0xff] %v238
        %v245 = vld [vmem:[%s164] sm:$0xff]
        %v246 = vld [vmem:[%s164 + $0x8] sm:$0xff]
        %v247 = vld [vmem:[%s164 + $0x10] sm:$0xff]
        %v248 = vld [vmem:[%s164 + $0x18] sm:$0xff]
        %253 = vrot.lane.b32.xlu0 %v245, 110
        %v254 = vpop.permute.xlu0 %253
        %255 = vrot.lane.b32.xlu0 %v246, 110
        %v256 = vpop.permute.xlu0 %255
        %257 = vrot.lane.b32.xlu0 %v247, 110
        %v258 = vpop.permute.xlu0 %257
        %259 = vrot.lane.b32.xlu0 %v248, 110
        %v260 = vpop.permute.xlu0 %259
        %vm261 = vcmask 900096
        %v262 = vsel %vm261, %v254, %v256
        %v263 = vsel %vm261, %v256, %v258
        %v264 = vsel %vm261, %v258, %v260
        %268 = vst [vmem:[#allocation2 + $0x48] sm:$0xff] %v262
        %269 = vst [vmem:[#allocation2 + $0x50] sm:$0xff] %v263
        %270 = vst [vmem:[#allocation2 + $0x58] sm:$0xff] %v264
        %v271 = vld [vmem:[%s164] sm:$0xff]
        %v272 = vld [vmem:[%s164 + $0x8] sm:$0xff]
        %v273 = vld [vmem:[%s164 + $0x10] sm:$0xff]
        %v274 = vld [vmem:[%s164 + $0x18] sm:$0xff]
        %279 = vrot.lane.b32.xlu0 %v271, 109
        %v280 = vpop.permute.xlu0 %279
        %281 = vrot.lane.b32.xlu0 %v272, 109
        %v282 = vpop.permute.xlu0 %281
        %283 = vrot.lane.b32.xlu0 %v273, 109
        %v284 = vpop.permute.xlu0 %283
        %285 = vrot.lane.b32.xlu0 %v274, 109
        %v286 = vpop.permute.xlu0 %285
        %vm287 = vcmask 891904
        %v288 = vsel %vm287, %v280, %v282
        %v289 = vsel %vm287, %v282, %v284
        %v290 = vsel %vm287, %v284, %v286
        %294 = vst [vmem:[#allocation2 + $0x60] sm:$0xff] %v288
        %295 = vst [vmem:[#allocation2 + $0x68] sm:$0xff] %v289
        %296 = vst [vmem:[#allocation2 + $0x70] sm:$0xff] %v290
        %v297 = vld [vmem:[%s164] sm:$0xff]
        %v298 = vld [vmem:[%s164 + $0x8] sm:$0xff]
        %v299 = vld [vmem:[%s164 + $0x10] sm:$0xff]
        %v300 = vld [vmem:[%s164 + $0x18] sm:$0xff]
        %305 = vrot.lane.b32.xlu0 %v297, 108
        %v306 = vpop.permute.xlu0 %305
        %307 = vrot.lane.b32.xlu0 %v298, 108
        %v308 = vpop.permute.xlu0 %307
        %309 = vrot.lane.b32.xlu0 %v299, 108
        %v310 = vpop.permute.xlu0 %309
        %311 = vrot.lane.b32.xlu0 %v300, 108
        %v312 = vpop.permute.xlu0 %311
        %vm313 = vcmask 883712
        %v314 = vsel %vm313, %v306, %v308
        %v315 = vsel %vm313, %v308, %v310
        %v316 = vsel %vm313, %v310, %v312
        %320 = vst [vmem:[#allocation2 + $0x78] sm:$0xff] %v314
        %321 = vst [vmem:[#allocation2 + $0x80] sm:$0xff] %v315
        %322 = vst [vmem:[#allocation2 + $0x88] sm:$0xff] %v316
        %v323 = vld [vmem:[%s164] sm:$0xff]
        %v324 = vld [vmem:[%s164 + $0x8] sm:$0xff]
        %v325 = vld [vmem:[%s164 + $0x10] sm:$0xff]
        %v326 = vld [vmem:[%s164 + $0x18] sm:$0xff]
        %331 = vrot.lane.b32.xlu0 %v323, 92
        %v332 = vpop.permute.xlu0 %331
        %333 = vrot.lane.b32.xlu0 %v324, 92
        %v334 = vpop.permute.xlu0 %333
        %335 = vrot.lane.b32.xlu0 %v325, 92
        %v336 = vpop.permute.xlu0 %335
        %337 = vrot.lane.b32.xlu0 %v326, 92
        %v338 = vpop.permute.xlu0 %337
        %vm339 = vcmask 752640
        %v340 = vsel %vm339, %v332, %v334
        %v341 = vsel %vm339, %v334, %v336
        %v342 = vsel %vm339, %v336, %v338
        %346 = vst [vmem:[#allocation2 + $0x90] sm:$0xff] %v340
        %347 = vst [vmem:[#allocation2 + $0x98] sm:$0xff] %v341
        %348 = vst [vmem:[#allocation2 + $0xa0] sm:$0xff] %v342
        %v349 = vld [vmem:[%s164] sm:$0xff]
        %v350 = vld [vmem:[%s164 + $0x8] sm:$0xff]
        %v351 = vld [vmem:[%s164 + $0x10] sm:$0xff]
        %v352 = vld [vmem:[%s164 + $0x18] sm:$0xff]
        %357 = vrot.lane.b32.xlu0 %v349, 91
        %v358 = vpop.permute.xlu0 %357
        %359 = vrot.lane.b32.xlu0 %v350, 91
        %v360 = vpop.permute.xlu0 %359
        %361 = vrot.lane.b32.xlu0 %v351, 91
        %v362 = vpop.permute.xlu0 %361
        %363 = vrot.lane.b32.xlu0 %v352, 91
        %v364 = vpop.permute.xlu0 %363
        %vm365 = vcmask 744448
        %v366 = vsel %vm365, %v358, %v360
        %v367 = vsel %vm365, %v360, %v362
        %v368 = vsel %vm365, %v362, %v364
        %372 = vst [vmem:[#allocation2 + $0xa8] sm:$0xff] %v366
        %373 = vst [vmem:[#allocation2 + $0xb0] sm:$0xff] %v367
        %374 = vst [vmem:[#allocation2 + $0xb8] sm:$0xff] %v368
        %v375 = vld [vmem:[%s164] sm:$0xff]
        %v376 = vld [vmem:[%s164 + $0x8] sm:$0xff]
        %v377 = vld [vmem:[%s164 + $0x10] sm:$0xff]
        %v378 = vld [vmem:[%s164 + $0x18] sm:$0xff]
        %383 = vrot.lane.b32.xlu0 %v375, 90
        %v384 = vpop.permute.xlu0 %383
        %385 = vrot.lane.b32.xlu0 %v376, 90
        %v386 = vpop.permute.xlu0 %385
        %387 = vrot.lane.b32.xlu0 %v377, 90
        %v388 = vpop.permute.xlu0 %387
        %389 = vrot.lane.b32.xlu0 %v378, 90
        %v390 = vpop.permute.xlu0 %389
        %vm391 = vcmask 736256
        %v392 = vsel %vm391, %v384, %v386
        %v393 = vsel %vm391, %v386, %v388
        %v394 = vsel %vm391, %v388, %v390
        %398 = vst [vmem:[#allocation2 + $0xc0] sm:$0xff] %v392
        %399 = vst [vmem:[#allocation2 + $0xc8] sm:$0xff] %v393
        %400 = vst [vmem:[#allocation2 + $0xd0] sm:$0xff] %v394
        %v401 = vld [vmem:[%s1] sm:$0xff]
        %v402 = vld [vmem:[#allocation2] sm:$0xff]
        %v403 = vld [vmem:[#allocation2 + $0x8] sm:$0xff]
        %v404 = vld [vmem:[#allocation2 + $0x10] sm:$0xff]
        %v405 = vld [vmem:[#allocation2 + $0x18] sm:$0xff]
        %v406 = vld [vmem:[#allocation2 + $0x20] sm:$0xff]
        %v407 = vld [vmem:[#allocation2 + $0x28] sm:$0xff]
        %v408 = vld [vmem:[#allocation2 + $0x30] sm:$0xff]
        %v409 = vld [vmem:[#allocation2 + $0x38] sm:$0xff]
        %v410 = vld [vmem:[#allocation2 + $0x40] sm:$0xff]
        %v411 = vld [vmem:[#allocation2 + $0x48] sm:$0xff]
        %v412 = vld [vmem:[#allocation2 + $0x50] sm:$0xff]
        %v413 = vld [vmem:[#allocation2 + $0x58] sm:$0xff]
        %v414 = vld [vmem:[#allocation2 + $0x60] sm:$0xff]
        %v415 = vld [vmem:[#allocation2 + $0x68] sm:$0xff]
        %v416 = vld [vmem:[#allocation2 + $0x70] sm:$0xff]
        %v417 = vld [vmem:[#allocation2 + $0x78] sm:$0xff]
        %v418 = vld [vmem:[#allocation2 + $0x80] sm:$0xff]
        %v419 = vld [vmem:[#allocation2 + $0x88] sm:$0xff]
        %v420 = vld [vmem:[#allocation2 + $0x90] sm:$0xff]
        %v421 = vld [vmem:[#allocation2 + $0x98] sm:$0xff]
        %v422 = vld [vmem:[#allocation2 + $0xa0] sm:$0xff]
        %v423 = vld [vmem:[#allocation2 + $0xa8] sm:$0xff]
        %v424 = vld [vmem:[#allocation2 + $0xb0] sm:$0xff]
        %v425 = vld [vmem:[#allocation2 + $0xb8] sm:$0xff]
        %v426 = vld [vmem:[#allocation2 + $0xc0] sm:$0xff]
        %v427 = vld [vmem:[#allocation2 + $0xc8] sm:$0xff]
        %v428 = vld [vmem:[#allocation2 + $0xd0] sm:$0xff]
        %v429 = vld [vmem:[%s2] sm:$0xff]
        %431 = vset.pattern.permute.xlu0 0
        %432 = vperm.xlu0 %431, %v429
        %v433 = vpop.permute.xlu0 %432
        %vm435 = vcmask 588800
        %v437 = vsel %vm435, %v401, 0
        %439 = vmatprep.subr.mxu0 0.0
        %440 = vmatpush1.msra.mxu0 0.0
        %441 = vmatprep.subr.mxu0 0.0
        %442 = vmatpush1.msra.mxu0 0.0
        %443 = vmatprep.subr.mxu0 0.0
        %444 = vmatpush1.msra.mxu0 0.0
        %445 = vmatprep.subr.mxu0 0.0
        %446 = vmatpush1.msra.mxu0 0.0
        %447 = vmatprep.subr.mxu0 0.0
        %448 = vmatpush1.msra.mxu0 0.0
        %449 = vmatprep.subr.mxu0 0.0
        %450 = vmatpush1.msra.mxu0 0.0
        %451 = vmatprep.subr.mxu0 0.0
        %452 = vmatpush1.msra.mxu0 0.0
        %453 = vmatprep.subr.mxu0 %v427
        %454 = vmatpush1.msra.mxu0 %v426
        %455 = vmatprep.subr.mxu0 %v424
        %456 = vmatpush1.msra.mxu0 %v423
        %457 = vmatprep.subr.mxu0 %v421
        %458 = vmatpush1.msra.mxu0 %v420
        %459 = vmatprep.subr.mxu0 %v418
        %460 = vmatpush1.msra.mxu0 %v417
        %461 = vmatprep.subr.mxu0 %v415
        %462 = vmatpush1.msra.mxu0 %v414
        %463 = vmatprep.subr.mxu0 %v412
        %464 = vmatpush1.msra.mxu0 %v411
        %465 = vmatprep.subr.mxu0 %v409
        %466 = vmatpush1.msra.mxu0 %v408
        %467 = vmatprep.subr.mxu0 %v406
        %468 = vmatpush1.msra.mxu0 %v405
        %469 = vmatprep.subr.mxu0 %v403
        %470 = vmatpush1.msra.mxu0 %v402
        %471 = vmatprep.subr.mxu0 0.0
        %472 = vmatpush2.msra.mxu0 0.0
        %473 = vmatprep.subr.mxu0 0.0
        %474 = vmatpush2.msra.mxu0 0.0
        %475 = vmatprep.subr.mxu0 0.0
        %476 = vmatpush2.msra.mxu0 0.0
        %477 = vmatprep.subr.mxu0 0.0
        %478 = vmatpush2.msra.mxu0 0.0
        %479 = vmatprep.subr.mxu0 0.0
        %480 = vmatpush2.msra.mxu0 0.0
        %481 = vmatprep.subr.mxu0 0.0
        %482 = vmatpush2.msra.mxu0 0.0
        %483 = vmatprep.subr.mxu0 0.0
        %484 = vmatpush2.msra.mxu0 0.0
        %485 = vmatprep.subr.mxu0 0.0
        %486 = vmatpush2.msra.mxu0 0.0
        %487 = vmatprep.subr.mxu0 0.0
        %488 = vmatpush2.msra.mxu0 0.0
        %489 = vmatprep.subr.mxu0 0.0
        %490 = vmatpush2.msra.mxu0 0.0
        %491 = vmatprep.subr.mxu0 0.0
        %492 = vmatpush2.msra.mxu0 0.0
        %493 = vmatprep.subr.mxu0 0.0
        %494 = vmatpush2.msra.mxu0 0.0
        %495 = vmatprep.subr.mxu0 0.0
        %496 = vmatpush2.msra.mxu0 0.0
        %497 = vmatprep.subr.mxu0 0.0
        %498 = vmatpush2.msra.mxu0 0.0
        %499 = vmatprep.subr.mxu0 0.0
        %500 = vmatpush2.msra.mxu0 0.0
        %501 = vmatprep.subr.mxu0 0.0
        %502 = vmatpush2.msra.mxu0 0.0
        %503 = vmatprep.mubr.f32.mxu0 0.0
        %504 = vmatmul.mubr.f32.gmra.mxu0 %v437
        %v505 = vpop.f32.mrf.mxu0
        %v506 = vadd.f32 %v433, %v505
        %v507 = vpop.f32.mrf.mxu0
        %v508 = vadd.f32 %v433, %v507
        %509 = vdwg.mxu0
        %510 = vmatprep.subr.mxu0 0.0
        %511 = vmatpush1.msra.mxu0 0.0
        %512 = vmatprep.subr.mxu0 0.0
        %513 = vmatpush1.msra.mxu0 0.0
        %514 = vmatprep.subr.mxu0 0.0
        %515 = vmatpush1.msra.mxu0 0.0
        %516 = vmatprep.subr.mxu0 0.0
        %517 = vmatpush1.msra.mxu0 0.0
        %518 = vmatprep.subr.mxu0 0.0
        %519 = vmatpush1.msra.mxu0 0.0
        %520 = vmatprep.subr.mxu0 0.0
        %521 = vmatpush1.msra.mxu0 0.0
        %522 = vmatprep.subr.mxu0 0.0
        %523 = vmatpush1.msra.mxu0 0.0
        %524 = vmatprep.subr.mxu0 0.0
        %525 = vmatpush1.msra.mxu0 %v428
        %526 = vmatprep.subr.mxu0 0.0
        %527 = vmatpush1.msra.mxu0 %v425
        %528 = vmatprep.subr.mxu0 0.0
        %529 = vmatpush1.msra.mxu0 %v422
        %530 = vmatprep.subr.mxu0 0.0
        %531 = vmatpush1.msra.mxu0 %v419
        %532 = vmatprep.subr.mxu0 0.0
        %533 = vmatpush1.msra.mxu0 %v416
        %534 = vmatprep.subr.mxu0 0.0
        %535 = vmatpush1.msra.mxu0 %v413
        %536 = vmatprep.subr.mxu0 0.0
        %537 = vmatpush1.msra.mxu0 %v410
        %538 = vmatprep.subr.mxu0 0.0
        %539 = vmatpush1.msra.mxu0 %v407
        %540 = vmatprep.subr.mxu0 0.0
        %541 = vmatpush1.msra.mxu0 %v404
        %542 = vmatprep.subr.mxu0 0.0
        %543 = vmatpush2.msra.mxu0 0.0
        %544 = vmatprep.subr.mxu0 0.0
        %545 = vmatpush2.msra.mxu0 0.0
        %546 = vmatprep.subr.mxu0 0.0
        %547 = vmatpush2.msra.mxu0 0.0
        %548 = vmatprep.subr.mxu0 0.0
        %549 = vmatpush2.msra.mxu0 0.0
        %550 = vmatprep.subr.mxu0 0.0
        %551 = vmatpush2.msra.mxu0 0.0
        %552 = vmatprep.subr.mxu0 0.0
        %553 = vmatpush2.msra.mxu0 0.0
        %554 = vmatprep.subr.mxu0 0.0
        %555 = vmatpush2.msra.mxu0 0.0
        %556 = vmatprep.subr.mxu0 0.0
        %557 = vmatpush2.msra.mxu0 0.0
        %558 = vmatprep.subr.mxu0 0.0
        %559 = vmatpush2.msra.mxu0 0.0
        %560 = vmatprep.subr.mxu0 0.0
        %561 = vmatpush2.msra.mxu0 0.0
        %562 = vmatprep.subr.mxu0 0.0
        %563 = vmatpush2.msra.mxu0 0.0
        %564 = vmatprep.subr.mxu0 0.0
        %565 = vmatpush2.msra.mxu0 0.0
        %566 = vmatprep.subr.mxu0 0.0
        %567 = vmatpush2.msra.mxu0 0.0
        %568 = vmatprep.subr.mxu0 0.0
        %569 = vmatpush2.msra.mxu0 0.0
        %570 = vmatprep.subr.mxu0 0.0
        %571 = vmatpush2.msra.mxu0 0.0
        %572 = vmatprep.subr.mxu0 0.0
        %573 = vmatpush2.msra.mxu0 0.0
        %574 = vmatprep.mubr.f32.mxu0 0.0
        %575 = vmatmul.mubr.f32.gmra.mxu0 %v437
        %v576 = vpop.f32.mrf.mxu0
        %v577 = vadd.f32 %v433, %v576
        %v578 = vpop.f32.mrf.mxu0
        %579 = vdwg.mxu0
        %580 = vst [vmem:[%s186] sm:$0xff] %v506
        %581 = vst [vmem:[%s186 + $0x8] sm:$0xff] %v508
        %582 = vst [vmem:[%s186 + $0x10] sm:$0xff] %v577
        %s583 = sand.u32 %s96, 1
        %s584 = scalar_lea.sflag [#allocation5], %s583
        %s585 = sand.u32 %s96, 1
        %s586 = smul.addr %s585, 24
        %s587 = scalar_lea.vmem [#allocation6], %s586
        // Predicated region
        $region37: #{tpu_custom_call.1} parent=31 // pred_check
          %p588 = pneg %p106
        $region38: #{tpu_custom_call.1} parent=31 // pred_check_branch
          %590 = sbr.rel (%p588) target = $region40
        $region39: #{tpu_custom_call.1} parent=31 // pred_region
          %s592 = ssub.s32 384, 384
          %593 = vsyncadd %s584, %s592
          %s594 = smul.addr %s20, 3
          %s595 = smul.addr %s594, 128
          %s596 = scalar_lea.hbm %s3, %s595
          %s598 = sshll.u32 %s587, 4
          %s599 = int_to_ptr.vmem [resolvable:$true] %s598
          %601 = dma.vmem_to_hbm [thread:$0]  %s599, 384, %s596, %s584
        $region40: #{tpu_custom_call.1} parent=31 // pred_fallthru
          _
      $region32: #{tpu_custom_call.1} parent=5 // pred_fallthru
        _
      %p602 = scmp.le.s32.totalorder 2, %s15
      // Predicated region
      $region41: #{tpu_custom_call.1} parent=5 // pred_check
        %p603 = pneg %p602
      $region42: #{tpu_custom_call.1} parent=5 // pred_check_branch
        %605 = sbr.rel (%p603) target = $region44
      $region43: #{tpu_custom_call.1} parent=5 // pred_region
        %s606 = ssub.s32 %s15, 2
        // Predicated region
        $region45: #{tpu_custom_call.1} parent=43 // pred_check
          %p607 = pneg %p112
        $region46: #{tpu_custom_call.1} parent=43 // pred_check_branch
          %609 = sbr.rel (%p607) target = $region48
        $region47: #{tpu_custom_call.1} parent=43 // pred_region
          %s610 = sand.u32 %s97, 1
          %s611 = scalar_lea.sflag [#allocation5], %s610
          %s612 = sand.u32 %s97, 1
          %s613 = smul.addr %s612, 24
          %s614 = scalar_lea.vmem [#allocation6], %s613
          %615 = dma.done %s611, 384
        $region48: #{tpu_custom_call.1} parent=43 // pred_fallthru
          _
      $region44: #{tpu_custom_call.1} parent=5 // pred_fallthru
        _
    $region6: #{tpu_custom_call.1} parent=1 // loop_footer
      %s19 = sadd.s32 1, %s15
    $region7: #{tpu_custom_call.1} parent=1 // loop_footer_branch
      %14 = sbr.rel target = $region3
    $region8: #{tpu_custom_call.1} parent=1 // loop_exit
      _
    %616 = vsyncpa [#allocation4], 1
    %s617 = scalar_lea.sflag [#allocation4], 1
    %618 = vsyncpa %s617, 1
    %619 = vsyncpa [#allocation5], 1
    %s620 = scalar_lea.sflag [#allocation5], 1
    %621 = vsyncpa %s620, 1

</llo_original>
